<compile_context>
chip_gen: v5e
topology: v5e:2x2
jax: 0.10.0
libtpu: 0.0.40
codegen_flags: <defaults>
</compile_context>

<pallas_src>
import functools

import jax
import jax.numpy as jnp
from jax.experimental import pallas as pl
from jax.experimental.pallas import tpu as pltpu


def _gated_attention_kernel(x_ref, w_vu_ref, b_vu_ref, ww_ref, bw_ref, out_ref,
                            *, D, K, isNorm):
    # Fused V/U projection: one bf16 MXU matmul with f32 accumulation.
    x = x_ref[...].astype(jnp.bfloat16)                                    # (N, L)
    z = jnp.dot(x, w_vu_ref[...],
                preferred_element_type=jnp.float32) + b_vu_ref[...]        # (N, 2D) f32

    a_v = jnp.tanh(z[:, :D])                                               # (N, D)
    a_u = jax.nn.sigmoid(z[:, D:])                                         # (N, D)
    a_mul = a_v * a_u                                                      # (N, D) f32

    if K == 1:
        # K == 1: VPU broadcast-multiply + lane reduce; avoids a padded MXU dot.
        ww = ww_ref[...].astype(jnp.float32)                               # (1, D)
        s_col = jnp.sum(a_mul * ww, axis=-1, keepdims=True) + bw_ref[...]  # (N, 1)
        scores = jnp.transpose(s_col, (1, 0))                              # (K, N)
    else:
        scores = jnp.einsum("kd,nd->kn",
                            ww_ref[...].astype(jnp.float32), a_mul,
                            preferred_element_type=jnp.float32) + bw_ref[...]  # (K, N)

    if isNorm:
        m = jnp.max(scores, axis=1, keepdims=True)
        e = jnp.exp(scores - m)
        out_ref[...] = e / jnp.sum(e, axis=1, keepdims=True)               # exact div
    else:
        out_ref[...] = scores


def pack_params(wv, bv, wu, bu, ww, bw, param_dtype=jnp.bfloat16):
    """One-time packing of PyTorch-layout params (wv/wu: (D,L), ww: (K,D)).

    Returns (w_vu, b_vu, ww_p, bw_p) ready for attention_gated(); no per-call
    transposes/reshapes remain in the hot path.
    """
    D, L = wv.shape
    K = ww.shape[0]
    w_vu = jnp.concatenate([wv.T, wu.T], axis=1).astype(param_dtype)   # (L, 2D)
    b_vu = jnp.concatenate([bv, bu]).reshape(1, 2 * D).astype(jnp.float32)
    ww_p = ww.astype(param_dtype)                                      # (K, D)
    bw_p = bw.reshape(K, 1).astype(jnp.float32)                        # (K, 1)
    return w_vu, b_vu, ww_p, bw_p


def attention_gated(x, w_vu, b_vu, ww, bw, isNorm=True):
    """x: (N, L) float32; packed params from pack_params(). Returns (K, N) f32."""
    N, L = x.shape
    K, D = ww.shape
    assert w_vu.shape == (L, 2 * D)

    kernel = functools.partial(_gated_attention_kernel, D=D, K=K, isNorm=isNorm)
    vmem = pl.BlockSpec(memory_space=pltpu.MemorySpace.VMEM)
    return pl.pallas_call(
        kernel,
        out_shape=jax.ShapeDtypeStruct((K, N), jnp.float32),
        in_specs=[vmem] * 5,
        out_specs=vmem,
    )(x, w_vu, b_vu, ww, bw)


# ----------------------------- references -----------------------------------

def _reference_f32(x, wv, bv, wu, bu, ww, bw, isNorm=True):
    a_v = jnp.tanh(x @ wv.T + bv)
    a_u = jax.nn.sigmoid(x @ wu.T + bu)
    a = (a_v * a_u) @ ww.T + bw          # (N, K)
    a = a.T                              # (K, N)
    return jax.nn.softmax(a, axis=1) if isNorm else a


def _reference_packed(x, w_vu, b_vu, ww_p, bw_p, D, isNorm=True):
    """Reference using the exact bf16-rounded params the kernel consumes."""
    xb = x.astype(jnp.bfloat16).astype(jnp.float32)
    w = w_vu.astype(jnp.float32)
    z = xb @ w + b_vu
    a_mul = jnp.tanh(z[:, :D]) * jax.nn.sigmoid(z[:, D:])
    a = a_mul @ ww_p.astype(jnp.float32).T + bw_p.reshape(1, -1)   # (N, K)
    a = a.T                                                        # (K, N)
    return jax.nn.softmax(a, axis=1) if isNorm else a


if __name__ == "__main__":
    # Module defaults: L=512, D=128, K=1; a small bag of N=8 instances.
    N, L, D, K = 8, 512, 128, 1

    key = jax.random.PRNGKey(0)
    kx, kwv, kbv, kwu, kbu, kww, kbw = jax.random.split(key, 7)

    x = jax.random.normal(kx, (N, L), dtype=jnp.float32)

    # Deterministic synthetic parameters (PyTorch Linear-style scale ~ 1/sqrt(fan_in)).
    wv = jax.random.uniform(kwv, (D, L), jnp.float32, -1.0, 1.0) / jnp.sqrt(L)
    bv = jax.random.uniform(kbv, (D,), jnp.float32, -1.0, 1.0) / jnp.sqrt(L)
    wu = jax.random.uniform(kwu, (D, L), jnp.float32, -1.0, 1.0) / jnp.sqrt(L)
    bu = jax.random.uniform(kbu, (D,), jnp.float32, -1.0, 1.0) / jnp.sqrt(L)
    ww = jax.random.uniform(kww, (K, D), jnp.float32, -1.0, 1.0) / jnp.sqrt(D)
    bw = jax.random.uniform(kbw, (K,), jnp.float32, -1.0, 1.0) / jnp.sqrt(D)

    # One-time parameter packing (fused + transposed + bf16), outside the hot path.
    w_vu, b_vu, ww_p, bw_p = pack_params(wv, bv, wu, bu, ww, bw)

    # isNorm=True path (default forward).
    out = attention_gated(x, w_vu, b_vu, ww_p, bw_p, isNorm=True)
    out = jax.block_until_ready(out)

    ref_packed = _reference_packed(x, w_vu, b_vu, ww_p, bw_p, D, isNorm=True)
    ref_f32 = _reference_f32(x, wv, bv, wu, bu, ww, bw, isNorm=True)

    assert out.shape == (K, N)
    # Tight match against a reference using the same bf16-rounded parameters.
    assert jnp.allclose(out, ref_packed, atol=1e-4, rtol=1e-4)
    # Loose match against the full-f32 PyTorch-equivalent reference.
    assert jnp.allclose(out, ref_f32, atol=2e-2, rtol=2e-2)
    # Softmax rows sum to 1 (exact division used in the kernel).
    assert jnp.allclose(jnp.sum(out, axis=1), 1.0, atol=1e-5)

    # isNorm=False path (raw transposed scores, no softmax).
    raw = attention_gated(x, w_vu, b_vu, ww_p, bw_p, isNorm=False)
    raw = jax.block_until_ready(raw)
    ref_raw = _reference_packed(x, w_vu, b_vu, ww_p, bw_p, D, isNorm=False)
    assert raw.shape == (K, N)
    assert jnp.allclose(raw, ref_raw, atol=1e-4, rtol=1e-4)

    print("KERNEL_OK")
</pallas_src>

<mosaic_0001>
module attributes {stable_mosaic.version = 11 : i64} {
  func.func @_gated_attention_kernel(%arg0: memref<8x512xf32, #tpu.memory_space<vmem>>, %arg1: memref<512x256xbf16, #tpu.memory_space<vmem>>, %arg2: memref<1x256xf32, #tpu.memory_space<vmem>>, %arg3: memref<1x128xbf16, #tpu.memory_space<vmem>>, %arg4: memref<1x1xf32, #tpu.memory_space<vmem>>, %arg5: memref<1x8xf32, #tpu.memory_space<vmem>>) attributes {dimension_semantics = [], scalar_prefetch = 0 : i64, scratch_operands = 0 : i64, tpu.core_type = #tpu.core_type<tc>} {
    %c0 = arith.constant 0 : index
    %c0_0 = arith.constant 0 : index
    %0 = vector.load %arg0[%c0, %c0_0] : memref<8x512xf32, #tpu.memory_space<vmem>>, vector<8x512xf32>
    %1 = arith.truncf %0 : vector<8x512xf32> to vector<8x512xbf16>
    %c0_1 = arith.constant 0 : index
    %c0_2 = arith.constant 0 : index
    %2 = vector.load %arg1[%c0_1, %c0_2] : memref<512x256xbf16, #tpu.memory_space<vmem>>, vector<512x256xbf16>
    %cst = arith.constant dense<0.000000e+00> : vector<8x256xf32>
    %3 = tpu.matmul %1, %2, %cst {dimension_numbers = #tpu.dot_dimension_numbers<[1], [0], [0], [1], [0, 0, 1, 1], [], []>} : vector<8x512xbf16>, vector<512x256xbf16>, vector<8x256xf32> -> vector<8x256xf32>
    %c0_3 = arith.constant 0 : index
    %c0_4 = arith.constant 0 : index
    %4 = vector.load %arg2[%c0_3, %c0_4] : memref<1x256xf32, #tpu.memory_space<vmem>>, vector<1x256xf32>
    %5 = vector.broadcast %4 : vector<1x256xf32> to vector<8x256xf32>
    %6 = arith.addf %3, %5 : vector<8x256xf32>
    %7 = vector.extract_strided_slice %6 {offsets = [0, 0], sizes = [8, 128], strides = [1, 1]} : vector<8x256xf32> to vector<8x128xf32>
    %8 = math.tanh %7 : vector<8x128xf32>
    %9 = vector.extract_strided_slice %6 {offsets = [0, 128], sizes = [8, 128], strides = [1, 1]} : vector<8x256xf32> to vector<8x128xf32>
    %10 = arith.negf %9 : vector<8x128xf32>
    %11 = math.exp %10 : vector<8x128xf32>
    %cst_5 = arith.constant 1.000000e+00 : f32
    %12 = vector.broadcast %cst_5 : f32 to vector<8x128xf32>
    %13 = arith.addf %12, %11 : vector<8x128xf32>
    %14 = arith.divf %12, %13 : vector<8x128xf32>
    %15 = arith.mulf %8, %14 : vector<8x128xf32>
    %c0_6 = arith.constant 0 : index
    %c0_7 = arith.constant 0 : index
    %16 = vector.load %arg3[%c0_6, %c0_7] : memref<1x128xbf16, #tpu.memory_space<vmem>>, vector<1x128xbf16>
    %17 = arith.extf %16 : vector<1x128xbf16> to vector<1x128xf32>
    %18 = vector.broadcast %17 : vector<1x128xf32> to vector<8x128xf32>
    %19 = arith.mulf %15, %18 : vector<8x128xf32>
    %cst_8 = arith.constant dense<0.000000e+00> : vector<8xf32>
    %20 = vector.multi_reduction <add>, %19, %cst_8 [1] : vector<8x128xf32> to vector<8xf32>
    %21 = vector.shape_cast %20 : vector<8xf32> to vector<8x1xf32>
    %c0_9 = arith.constant 0 : index
    %c0_10 = arith.constant 0 : index
    %22 = vector.load %arg4[%c0_9, %c0_10] : memref<1x1xf32, #tpu.memory_space<vmem>>, vector<1x1xf32>
    %23 = vector.broadcast %22 : vector<1x1xf32> to vector<8x1xf32>
    %24 = arith.addf %21, %23 : vector<8x1xf32>
    %25 = tpu.transpose %24, [1, 0] : vector<8x1xf32> -> vector<1x8xf32>
    %cst_11 = arith.constant dense<0xFF800000> : vector<1xf32>
    %26 = vector.multi_reduction <maximumf>, %25, %cst_11 [1] : vector<1x8xf32> to vector<1xf32>
    %27 = vector.shape_cast %26 : vector<1xf32> to vector<1x1xf32>
    %28 = vector.broadcast %27 : vector<1x1xf32> to vector<1x8xf32>
    %29 = arith.subf %25, %28 : vector<1x8xf32>
    %30 = math.exp %29 : vector<1x8xf32>
    %cst_12 = arith.constant dense<0.000000e+00> : vector<1xf32>
    %31 = vector.multi_reduction <add>, %30, %cst_12 [1] : vector<1x8xf32> to vector<1xf32>
    %32 = vector.shape_cast %31 : vector<1xf32> to vector<1x1xf32>
    %33 = vector.broadcast %32 : vector<1x1xf32> to vector<1x8xf32>
    %34 = arith.divf %30, %33 : vector<1x8xf32>
    %c0_13 = arith.constant 0 : index
    %c0_14 = arith.constant 0 : index
    %35 = vector.load %arg5[%c0_13, %c0_14] : memref<1x8xf32, #tpu.memory_space<vmem>>, vector<1x8xf32>
    tpu.vector_store %arg5[%c0_13, %c0_14], %34 {strides = array<i32>} : memref<1x8xf32, #tpu.memory_space<vmem>>, vector<1x8xf32>,
    return
  }
}

</mosaic_0001>

<llo_original>
// kernel: tpu_custom_call.1
$region0: #{tpu_custom_call.1}
  #allocation0 [shape = 'u32[]', space=smem, size = 0x4, offset = 0x4, fixed_abs, tag = 'smem constant byte address 0x4 - core index']
  #allocation1 [shape = 'u32[72,128]{1,0:T(1,128)}', space=vmem, size = 0x9000, scoped, tag = 'internal scratch']
  #allocation2 [shape = 'f32[1,1]{1,0:T(1,128)S(1)}', space=vmem, size = 0x200, scoped, tag = 'scoped memory for tpu_custom_call.1']
  %s0 = inlined_call_operand.hbm [shape: f32[8,512], index: 0, kind: input, shape index: {}]
  %s1 = inlined_call_operand.hbm [shape: bf16[512,256], index: 1, kind: input, shape index: {}]
  %s2 = inlined_call_operand.vmem [shape: f32[1,256], index: 2, kind: input, shape index: {}]
  %s3 = inlined_call_operand.vmem [shape: bf16[1,128], index: 3, kind: input, shape index: {}]
  %s4 = inlined_call_operand.<no memory space> [shape: f32[1,1], index: 4, kind: input, shape index: {}]
  %s5 = inlined_call_operand.hbm [shape: f32[1,8], index: 5, kind: output, shape index: {}]
  %s6 = sld [smem:[#allocation0]]
  $region38: #{tpu_custom_call.1} parent=0
    _
  %s8 = ssub.s32 1, %s6
  %s9 = scalar_select 0, %s8, %s6
  %v10 = vstv %s4
  %11 = vst [vmem:[#allocation2] sm:$0x1] %v10
  $region1: #{tpu_custom_call.1} parent=0
    #allocation3 [shape = 'u8[16384]{0}', space=vmem, size = 0x4000, scoped, tag = 'input window, operand 0, single buffered']
    #allocation4 [shape = 's32[1]{0}', space=sflag, size = 0x4, scoped, tag = 'scoped memory for tpu_custom_call.1']
    #allocation5 [shape = 's32[1]{0}', space=sflag, size = 0x4, scoped, tag = 'scoped memory for tpu_custom_call.1']
    #allocation6 [shape = 'u8[262144]{0}', space=vmem, size = 0x40000, scoped, tag = 'input window, operand 1, single buffered']
    #allocation7 [shape = 's32[1]{0}', space=sflag, size = 0x4, scoped, tag = 'scoped memory for tpu_custom_call.1']
    #allocation8 [shape = 'u8[512]{0}', space=vmem, size = 0x400, scoped, tag = 'output window, operand 0, single buffered']
    %12 = vsyncpa [#allocation4], 0
    %13 = vsyncpa [#allocation7], 0
    %14 = vsyncpa [#allocation5], 0
    // Predicated region
    $region2: #{tpu_custom_call.1} parent=1 // pred_check
      _
    $region3: #{tpu_custom_call.1} parent=1 // pred_check_branch
      %16 = sbr.rel (0) target = $region5
    $region4: #{tpu_custom_call.1} parent=1 // pred_region
      %18 = vsyncadd [#allocation4], 0
      %s20 = sshll.u32 %s0, 4
      %s21 = int_to_ptr.hbm [resolvable:$true] %s20
      %s22 = sshll.u32 [#allocation3], 4
      %s23 = int_to_ptr.vmem [resolvable:$true] %s22
      %25 = dma.hbm_to_vmem [thread:$0]  %s21, 512, %s23, [#allocation4]
    $region5: #{tpu_custom_call.1} parent=1 // pred_fallthru
      _
    // Predicated region
    $region6: #{tpu_custom_call.1} parent=1 // pred_check
      _
    $region7: #{tpu_custom_call.1} parent=1 // pred_check_branch
      %27 = sbr.rel (0) target = $region9
    $region8: #{tpu_custom_call.1} parent=1 // pred_region
      %29 = vsyncadd [#allocation7], 0
      %s30 = sshll.u32 %s1, 4
      %s31 = int_to_ptr.hbm [resolvable:$true] %s30
      %s32 = sshll.u32 [#allocation6], 4
      %s33 = int_to_ptr.vmem [resolvable:$true] %s32
      %38 = dma.hbm_to_vmem [thread:$0]  %s31, 8192, %s33, [#allocation7], 128, 128, 8
    $region9: #{tpu_custom_call.1} parent=1 // pred_fallthru
      _
    // Predicated region
    $region10: #{tpu_custom_call.1} parent=1 // pred_check
      _
    $region11: #{tpu_custom_call.1} parent=1 // pred_check_branch
      %40 = sbr.rel (0) target = $region13
    $region12: #{tpu_custom_call.1} parent=1 // pred_region
      _
    $region13: #{tpu_custom_call.1} parent=1 // pred_fallthru
      _
    // Predicated region
    $region14: #{tpu_custom_call.1} parent=1 // pred_check
      _
    $region15: #{tpu_custom_call.1} parent=1 // pred_check_branch
      %42 = sbr.rel (0) target = $region17
    $region16: #{tpu_custom_call.1} parent=1 // pred_region
      _
    $region17: #{tpu_custom_call.1} parent=1 // pred_fallthru
      _
    // Predicated region
    $region18: #{tpu_custom_call.1} parent=1 // pred_check
      _
    $region19: #{tpu_custom_call.1} parent=1 // pred_check_branch
      %44 = sbr.rel (0) target = $region21
    $region20: #{tpu_custom_call.1} parent=1 // pred_region
      _
    $region21: #{tpu_custom_call.1} parent=1 // pred_fallthru
      _
    // Predicated region
    $region22: #{tpu_custom_call.1} parent=1 // pred_check
      _
    $region23: #{tpu_custom_call.1} parent=1 // pred_check_branch
      %46 = sbr.rel (0) target = $region25
    $region24: #{tpu_custom_call.1} parent=1 // pred_region
      %48 = dma.done [#allocation4], 512
    $region25: #{tpu_custom_call.1} parent=1 // pred_fallthru
      _
    // Predicated region
    $region26: #{tpu_custom_call.1} parent=1 // pred_check
      _
    $region27: #{tpu_custom_call.1} parent=1 // pred_check_branch
      %50 = sbr.rel (0) target = $region29
    $region28: #{tpu_custom_call.1} parent=1 // pred_region
      %52 = dma.done [#allocation7], 8192
    $region29: #{tpu_custom_call.1} parent=1 // pred_fallthru
      _
    %v53 = vld [vmem:[#allocation3] sm:$0xff]
    %v54 = vld [vmem:[#allocation3 + $0x8] sm:$0xff]
    %v55 = vld [vmem:[#allocation3 + $0x10] sm:$0xff]
    %v56 = vld [vmem:[#allocation3 + $0x18] sm:$0xff]
    %v57 = vpack.c.bf16 %v53, %v53
    %v58 = vpack.c.bf16 %v54, %v54
    %v59 = vpack.c.bf16 %v55, %v55
    %v60 = vpack.c.bf16 %v56, %v56
    %v61 = vld [vmem:[#allocation6] sm:$0xff]
    %v62 = vld [vmem:[#allocation6 + $0x8] sm:$0xff]
    %v63 = vld [vmem:[#allocation6 + $0x10] sm:$0xff]
    %v64 = vld [vmem:[#allocation6 + $0x18] sm:$0xff]
    %v65 = vld [vmem:[#allocation6 + $0x20] sm:$0xff]
    %v66 = vld [vmem:[#allocation6 + $0x28] sm:$0xff]
    %v67 = vld [vmem:[#allocation6 + $0x30] sm:$0xff]
    %v68 = vld [vmem:[#allocation6 + $0x38] sm:$0xff]
    %v69 = vld [vmem:[#allocation6 + $0x40] sm:$0xff]
    %v70 = vld [vmem:[#allocation6 + $0x48] sm:$0xff]
    %v71 = vld [vmem:[#allocation6 + $0x50] sm:$0xff]
    %v72 = vld [vmem:[#allocation6 + $0x58] sm:$0xff]
    %v73 = vld [vmem:[#allocation6 + $0x60] sm:$0xff]
    %v74 = vld [vmem:[#allocation6 + $0x68] sm:$0xff]
    %v75 = vld [vmem:[#allocation6 + $0x70] sm:$0xff]
    %v76 = vld [vmem:[#allocation6 + $0x78] sm:$0xff]
    %v77 = vld [vmem:[#allocation6 + $0x80] sm:$0xff]
    %v78 = vld [vmem:[#allocation6 + $0x88] sm:$0xff]
    %v79 = vld [vmem:[#allocation6 + $0x90] sm:$0xff]
    %v80 = vld [vmem:[#allocation6 + $0x98] sm:$0xff]
    %v81 = vld [vmem:[#allocation6 + $0xa0] sm:$0xff]
    %v82 = vld [vmem:[#allocation6 + $0xa8] sm:$0xff]
    %v83 = vld [vmem:[#allocation6 + $0xb0] sm:$0xff]
    %v84 = vld [vmem:[#allocation6 + $0xb8] sm:$0xff]
    %v85 = vld [vmem:[#allocation6 + $0xc0] sm:$0xff]
    %v86 = vld [vmem:[#allocation6 + $0xc8] sm:$0xff]
    %v87 = vld [vmem:[#allocation6 + $0xd0] sm:$0xff]
    %v88 = vld [vmem:[#allocation6 + $0xd8] sm:$0xff]
    %v89 = vld [vmem:[#allocation6 + $0xe0] sm:$0xff]
    %v90 = vld [vmem:[#allocation6 + $0xe8] sm:$0xff]
    %v91 = vld [vmem:[#allocation6 + $0xf0] sm:$0xff]
    %v92 = vld [vmem:[#allocation6 + $0xf8] sm:$0xff]
    %v93 = vld [vmem:[#allocation6 + $0x100] sm:$0xff]
    %v94 = vld [vmem:[#allocation6 + $0x108] sm:$0xff]
    %v95 = vld [vmem:[#allocation6 + $0x110] sm:$0xff]
    %v96 = vld [vmem:[#allocation6 + $0x118] sm:$0xff]
    %v97 = vld [vmem:[#allocation6 + $0x120] sm:$0xff]
    %v98 = vld [vmem:[#allocation6 + $0x128] sm:$0xff]
    %v99 = vld [vmem:[#allocation6 + $0x130] sm:$0xff]
    %v100 = vld [vmem:[#allocation6 + $0x138] sm:$0xff]
    %v101 = vld [vmem:[#allocation6 + $0x140] sm:$0xff]
    %v102 = vld [vmem:[#allocation6 + $0x148] sm:$0xff]
    %v103 = vld [vmem:[#allocation6 + $0x150] sm:$0xff]
    %v104 = vld [vmem:[#allocation6 + $0x158] sm:$0xff]
    %v105 = vld [vmem:[#allocation6 + $0x160] sm:$0xff]
    %v106 = vld [vmem:[#allocation6 + $0x168] sm:$0xff]
    %v107 = vld [vmem:[#allocation6 + $0x170] sm:$0xff]
    %v108 = vld [vmem:[#allocation6 + $0x178] sm:$0xff]
    %v109 = vld [vmem:[#allocation6 + $0x180] sm:$0xff]
    %v110 = vld [vmem:[#allocation6 + $0x188] sm:$0xff]
    %v111 = vld [vmem:[#allocation6 + $0x190] sm:$0xff]
    %v112 = vld [vmem:[#allocation6 + $0x198] sm:$0xff]
    %v113 = vld [vmem:[#allocation6 + $0x1a0] sm:$0xff]
    %v114 = vld [vmem:[#allocation6 + $0x1a8] sm:$0xff]
    %v115 = vld [vmem:[#allocation6 + $0x1b0] sm:$0xff]
    %v116 = vld [vmem:[#allocation6 + $0x1b8] sm:$0xff]
    %v117 = vld [vmem:[#allocation6 + $0x1c0] sm:$0xff]
    %v118 = vld [vmem:[#allocation6 + $0x1c8] sm:$0xff]
    %v119 = vld [vmem:[#allocation6 + $0x1d0] sm:$0xff]
    %v120 = vld [vmem:[#allocation6 + $0x1d8] sm:$0xff]
    %v121 = vld [vmem:[#allocation6 + $0x1e0] sm:$0xff]
    %v122 = vld [vmem:[#allocation6 + $0x1e8] sm:$0xff]
    %v123 = vld [vmem:[#allocation6 + $0x1f0] sm:$0xff]
    %v124 = vld [vmem:[#allocation6 + $0x1f8] sm:$0xff]
    %v125 = vld [vmem:[%s2] sm:$0x3]
    %v127 = vperm.slane %v125, 0
    %v128 = vperm.slane %v125, 1
    %v195 = vunpack.c.l.b16 %v61
    %v196 = vunpack.c.h.b16 %v61
    %v197 = vunpack.c.l.b16 %v62
    %v198 = vunpack.c.h.b16 %v62
    %v199 = vunpack.c.l.b16 %v63
    %v200 = vunpack.c.h.b16 %v63
    %v201 = vunpack.c.l.b16 %v64
    %v202 = vunpack.c.h.b16 %v64
    %v203 = vunpack.c.l.b16 %v65
    %v204 = vunpack.c.h.b16 %v65
    %v205 = vunpack.c.l.b16 %v66
    %v206 = vunpack.c.h.b16 %v66
    %v207 = vunpack.c.l.b16 %v67
    %v208 = vunpack.c.h.b16 %v67
    %v209 = vunpack.c.l.b16 %v68
    %v210 = vunpack.c.h.b16 %v68
    %v211 = vunpack.c.l.b16 %v69
    %v212 = vunpack.c.h.b16 %v69
    %v213 = vunpack.c.l.b16 %v70
    %v214 = vunpack.c.h.b16 %v70
    %v215 = vunpack.c.l.b16 %v71
    %v216 = vunpack.c.h.b16 %v71
    %v217 = vunpack.c.l.b16 %v72
    %v218 = vunpack.c.h.b16 %v72
    %v219 = vunpack.c.l.b16 %v73
    %v220 = vunpack.c.h.b16 %v73
    %v221 = vunpack.c.l.b16 %v74
    %v222 = vunpack.c.h.b16 %v74
    %v223 = vunpack.c.l.b16 %v75
    %v224 = vunpack.c.h.b16 %v75
    %v225 = vunpack.c.l.b16 %v76
    %v226 = vunpack.c.h.b16 %v76
    %v227 = vunpack.c.l.b16 %v77
    %v228 = vunpack.c.h.b16 %v77
    %v229 = vunpack.c.l.b16 %v78
    %v230 = vunpack.c.h.b16 %v78
    %v231 = vunpack.c.l.b16 %v79
    %v232 = vunpack.c.h.b16 %v79
    %v233 = vunpack.c.l.b16 %v80
    %v234 = vunpack.c.h.b16 %v80
    %v235 = vunpack.c.l.b16 %v81
    %v236 = vunpack.c.h.b16 %v81
    %v237 = vunpack.c.l.b16 %v82
    %v238 = vunpack.c.h.b16 %v82
    %v239 = vunpack.c.l.b16 %v83
    %v240 = vunpack.c.h.b16 %v83
    %v241 = vunpack.c.l.b16 %v84
    %v242 = vunpack.c.h.b16 %v84
    %v243 = vunpack.c.l.b16 %v85
    %v244 = vunpack.c.h.b16 %v85
    %v245 = vunpack.c.l.b16 %v86
    %v246 = vunpack.c.h.b16 %v86
    %v247 = vunpack.c.l.b16 %v87
    %v248 = vunpack.c.h.b16 %v87
    %v249 = vunpack.c.l.b16 %v88
    %v250 = vunpack.c.h.b16 %v88
    %v251 = vunpack.c.l.b16 %v89
    %v252 = vunpack.c.h.b16 %v89
    %v253 = vunpack.c.l.b16 %v90
    %v254 = vunpack.c.h.b16 %v90
    %v255 = vunpack.c.l.b16 %v91
    %v256 = vunpack.c.h.b16 %v91
    %v257 = vunpack.c.l.b16 %v92
    %v258 = vunpack.c.h.b16 %v92
    %v259 = vunpack.c.l.b16 %v93
    %v260 = vunpack.c.h.b16 %v93
    %v261 = vunpack.c.l.b16 %v94
    %v262 = vunpack.c.h.b16 %v94
    %v263 = vunpack.c.l.b16 %v95
    %v264 = vunpack.c.h.b16 %v95
    %v265 = vunpack.c.l.b16 %v96
    %v266 = vunpack.c.h.b16 %v96
    %v267 = vunpack.c.l.b16 %v97
    %v268 = vunpack.c.h.b16 %v97
    %v269 = vunpack.c.l.b16 %v98
    %v270 = vunpack.c.h.b16 %v98
    %v271 = vunpack.c.l.b16 %v99
    %v272 = vunpack.c.h.b16 %v99
    %v273 = vunpack.c.l.b16 %v100
    %v274 = vunpack.c.h.b16 %v100
    %v275 = vunpack.c.l.b16 %v101
    %v276 = vunpack.c.h.b16 %v101
    %v277 = vunpack.c.l.b16 %v102
    %v278 = vunpack.c.h.b16 %v102
    %v279 = vunpack.c.l.b16 %v103
    %v280 = vunpack.c.h.b16 %v103
    %v281 = vunpack.c.l.b16 %v104
    %v282 = vunpack.c.h.b16 %v104
    %v283 = vunpack.c.l.b16 %v105
    %v284 = vunpack.c.h.b16 %v105
    %v285 = vunpack.c.l.b16 %v106
    %v286 = vunpack.c.h.b16 %v106
    %v287 = vunpack.c.l.b16 %v107
    %v288 = vunpack.c.h.b16 %v107
    %v289 = vunpack.c.l.b16 %v108
    %v290 = vunpack.c.h.b16 %v108
    %v291 = vunpack.c.l.b16 %v109
    %v292 = vunpack.c.h.b16 %v109
    %v293 = vunpack.c.l.b16 %v110
    %v294 = vunpack.c.h.b16 %v110
    %v295 = vunpack.c.l.b16 %v111
    %v296 = vunpack.c.h.b16 %v111
    %v297 = vunpack.c.l.b16 %v112
    %v298 = vunpack.c.h.b16 %v112
    %v299 = vunpack.c.l.b16 %v113
    %v300 = vunpack.c.h.b16 %v113
    %v301 = vunpack.c.l.b16 %v114
    %v302 = vunpack.c.h.b16 %v114
    %v303 = vunpack.c.l.b16 %v115
    %v304 = vunpack.c.h.b16 %v115
    %v305 = vunpack.c.l.b16 %v116
    %v306 = vunpack.c.h.b16 %v116
    %v307 = vunpack.c.l.b16 %v117
    %v308 = vunpack.c.h.b16 %v117
    %v309 = vunpack.c.l.b16 %v118
    %v310 = vunpack.c.h.b16 %v118
    %v311 = vunpack.c.l.b16 %v119
    %v312 = vunpack.c.h.b16 %v119
    %v313 = vunpack.c.l.b16 %v120
    %v314 = vunpack.c.h.b16 %v120
    %v315 = vunpack.c.l.b16 %v121
    %v316 = vunpack.c.h.b16 %v121
    %v317 = vunpack.c.l.b16 %v122
    %v318 = vunpack.c.h.b16 %v122
    %v319 = vunpack.c.l.b16 %v123
    %v320 = vunpack.c.h.b16 %v123
    %v321 = vunpack.c.l.b16 %v124
    %v322 = vunpack.c.h.b16 %v124
    %v323 = vpack.c.b16 %v197, %v195
    %v324 = vpack.c.b16 %v198, %v196
    %v325 = vpack.c.b16 %v201, %v199
    %v326 = vpack.c.b16 %v202, %v200
    %v327 = vpack.c.b16 %v205, %v203
    %v328 = vpack.c.b16 %v206, %v204
    %v329 = vpack.c.b16 %v209, %v207
    %v330 = vpack.c.b16 %v210, %v208
    %v331 = vpack.c.b16 %v213, %v211
    %v332 = vpack.c.b16 %v214, %v212
    %v333 = vpack.c.b16 %v217, %v215
    %v334 = vpack.c.b16 %v218, %v216
    %v335 = vpack.c.b16 %v221, %v219
    %v336 = vpack.c.b16 %v222, %v220
    %v337 = vpack.c.b16 %v225, %v223
    %v338 = vpack.c.b16 %v226, %v224
    %v339 = vpack.c.b16 %v229, %v227
    %v340 = vpack.c.b16 %v230, %v228
    %v341 = vpack.c.b16 %v233, %v231
    %v342 = vpack.c.b16 %v234, %v232
    %v343 = vpack.c.b16 %v237, %v235
    %v344 = vpack.c.b16 %v238, %v236
    %v345 = vpack.c.b16 %v241, %v239
    %v346 = vpack.c.b16 %v242, %v240
    %v347 = vpack.c.b16 %v245, %v243
    %v348 = vpack.c.b16 %v246, %v244
    %v349 = vpack.c.b16 %v249, %v247
    %v350 = vpack.c.b16 %v250, %v248
    %v351 = vpack.c.b16 %v253, %v251
    %v352 = vpack.c.b16 %v254, %v252
    %v353 = vpack.c.b16 %v257, %v255
    %v354 = vpack.c.b16 %v258, %v256
    %v355 = vpack.c.b16 %v261, %v259
    %v356 = vpack.c.b16 %v262, %v260
    %v357 = vpack.c.b16 %v265, %v263
    %v358 = vpack.c.b16 %v266, %v264
    %v359 = vpack.c.b16 %v269, %v267
    %v360 = vpack.c.b16 %v270, %v268
    %v361 = vpack.c.b16 %v273, %v271
    %v362 = vpack.c.b16 %v274, %v272
    %v363 = vpack.c.b16 %v277, %v275
    %v364 = vpack.c.b16 %v278, %v276
    %v365 = vpack.c.b16 %v281, %v279
    %v366 = vpack.c.b16 %v282, %v280
    %v367 = vpack.c.b16 %v285, %v283
    %v368 = vpack.c.b16 %v286, %v284
    %v369 = vpack.c.b16 %v289, %v287
    %v370 = vpack.c.b16 %v290, %v288
    %v371 = vpack.c.b16 %v293, %v291
    %v372 = vpack.c.b16 %v294, %v292
    %v373 = vpack.c.b16 %v297, %v295
    %v374 = vpack.c.b16 %v298, %v296
    %v375 = vpack.c.b16 %v301, %v299
    %v376 = vpack.c.b16 %v302, %v300
    %v377 = vpack.c.b16 %v305, %v303
    %v378 = vpack.c.b16 %v306, %v304
    %v379 = vpack.c.b16 %v309, %v307
    %v380 = vpack.c.b16 %v310, %v308
    %v381 = vpack.c.b16 %v313, %v311
    %v382 = vpack.c.b16 %v314, %v312
    %v383 = vpack.c.b16 %v317, %v315
    %v384 = vpack.c.b16 %v318, %v316
    %v385 = vpack.c.b16 %v321, %v319
    %v386 = vpack.c.b16 %v322, %v320
    %451 = vmatpush.bf16.msra.mxu0 %v337
    %452 = vmatpush.bf16.msra.mxu0 %v335
    %453 = vmatpush.bf16.msra.mxu0 %v333
    %454 = vmatpush.bf16.msra.mxu0 %v331
    %455 = vmatpush.bf16.msra.mxu0 %v329
    %456 = vmatpush.bf16.msra.mxu0 %v327
    %457 = vmatpush.bf16.msra.mxu0 %v325
    %458 = vmatpush.bf16.msra.mxu0 %v323
    %459 = vmatmul.bf16.gmra.mxu0 %v57
    %v460 = vpop.f32.mrf.mxu0
    %v461 = vadd.f32 %v127, %v460
    %v462 = vpop.f32.mrf.mxu0
    %463 = vdwg.mxu0
    %464 = vmatpush.bf16.msra.mxu0 %v353
    %465 = vmatpush.bf16.msra.mxu0 %v351
    %466 = vmatpush.bf16.msra.mxu0 %v349
    %467 = vmatpush.bf16.msra.mxu0 %v347
    %468 = vmatpush.bf16.msra.mxu0 %v345
    %469 = vmatpush.bf16.msra.mxu0 %v343
    %470 = vmatpush.bf16.msra.mxu0 %v341
    %471 = vmatpush.bf16.msra.mxu0 %v339
    %472 = vmatmul.bf16.gmra.mxu0 %v58
    %v473 = vpop.f32.mrf.mxu0
    %v474 = vadd.f32 %v461, %v473
    %v475 = vpop.f32.mrf.mxu0
    %476 = vdwg.mxu0
    %477 = vmatpush.bf16.msra.mxu0 %v369
    %478 = vmatpush.bf16.msra.mxu0 %v367
    %479 = vmatpush.bf16.msra.mxu0 %v365
    %480 = vmatpush.bf16.msra.mxu0 %v363
    %481 = vmatpush.bf16.msra.mxu0 %v361
    %482 = vmatpush.bf16.msra.mxu0 %v359
    %483 = vmatpush.bf16.msra.mxu0 %v357
    %484 = vmatpush.bf16.msra.mxu0 %v355
    %485 = vmatmul.bf16.gmra.mxu0 %v59
    %v486 = vpop.f32.mrf.mxu0
    %v487 = vadd.f32 %v474, %v486
    %v488 = vpop.f32.mrf.mxu0
    %489 = vdwg.mxu0
    %490 = vmatpush.bf16.msra.mxu0 %v385
    %491 = vmatpush.bf16.msra.mxu0 %v383
    %492 = vmatpush.bf16.msra.mxu0 %v381
    %493 = vmatpush.bf16.msra.mxu0 %v379
    %494 = vmatpush.bf16.msra.mxu0 %v377
    %495 = vmatpush.bf16.msra.mxu0 %v375
    %496 = vmatpush.bf16.msra.mxu0 %v373
    %497 = vmatpush.bf16.msra.mxu0 %v371
    %498 = vmatmul.bf16.gmra.mxu0 %v60
    %v499 = vpop.f32.mrf.mxu0
    %v500 = vadd.f32 %v487, %v499
    %v501 = vpop.f32.mrf.mxu0
    %502 = vdwg.mxu0
    %503 = vmatpush.bf16.msra.mxu0 %v338
    %504 = vmatpush.bf16.msra.mxu0 %v336
    %505 = vmatpush.bf16.msra.mxu0 %v334
    %506 = vmatpush.bf16.msra.mxu0 %v332
    %507 = vmatpush.bf16.msra.mxu0 %v330
    %508 = vmatpush.bf16.msra.mxu0 %v328
    %509 = vmatpush.bf16.msra.mxu0 %v326
    %510 = vmatpush.bf16.msra.mxu0 %v324
    %511 = vmatmul.bf16.gmra.mxu0 %v57
    %v512 = vpop.f32.mrf.mxu0
    %v513 = vadd.f32 %v128, %v512
    %v514 = vpop.f32.mrf.mxu0
    %515 = vdwg.mxu0
    %516 = vmatpush.bf16.msra.mxu0 %v354
    %517 = vmatpush.bf16.msra.mxu0 %v352
    %518 = vmatpush.bf16.msra.mxu0 %v350
    %519 = vmatpush.bf16.msra.mxu0 %v348
    %520 = vmatpush.bf16.msra.mxu0 %v346
    %521 = vmatpush.bf16.msra.mxu0 %v344
    %522 = vmatpush.bf16.msra.mxu0 %v342
    %523 = vmatpush.bf16.msra.mxu0 %v340
    %524 = vmatmul.bf16.gmra.mxu0 %v58
    %v525 = vpop.f32.mrf.mxu0
    %v526 = vadd.f32 %v513, %v525
    %v527 = vpop.f32.mrf.mxu0
    %528 = vdwg.mxu0
    %529 = vmatpush.bf16.msra.mxu0 %v370
    %530 = vmatpush.bf16.msra.mxu0 %v368
    %531 = vmatpush.bf16.msra.mxu0 %v366
    %532 = vmatpush.bf16.msra.mxu0 %v364
    %533 = vmatpush.bf16.msra.mxu0 %v362
    %534 = vmatpush.bf16.msra.mxu0 %v360
    %535 = vmatpush.bf16.msra.mxu0 %v358
    %536 = vmatpush.bf16.msra.mxu0 %v356
    %537 = vmatmul.bf16.gmra.mxu0 %v59
    %v538 = vpop.f32.mrf.mxu0
    %v539 = vadd.f32 %v526, %v538
    %v540 = vpop.f32.mrf.mxu0
    %541 = vdwg.mxu0
    %542 = vmatpush.bf16.msra.mxu0 %v386
    %543 = vmatpush.bf16.msra.mxu0 %v384
    %544 = vmatpush.bf16.msra.mxu0 %v382
    %545 = vmatpush.bf16.msra.mxu0 %v380
    %546 = vmatpush.bf16.msra.mxu0 %v378
    %547 = vmatpush.bf16.msra.mxu0 %v376
    %548 = vmatpush.bf16.msra.mxu0 %v374
    %549 = vmatpush.bf16.msra.mxu0 %v372
    %550 = vmatmul.bf16.gmra.mxu0 %v60
    %v551 = vpop.f32.mrf.mxu0
    %v552 = vadd.f32 %v539, %v551
    %v553 = vpop.f32.mrf.mxu0
    %554 = vdwg.mxu0
    %v555 = vtanh.pop %v500
    %v556 = vxor.u32 %v552, 2147483648
    %v557 = vmul.f32 %v556, 1.442695
    %v558 = vpow.pop %v557
    %v559 = vadd.f32 %v558, 1.0
    %v560 = vrcp.pop %v559
    %v561 = vmul.f32 %v559, %v560
    %v562 = vsub.f32 1.0, %v561
    %v563 = vmul.f32 %v560, %v562
    %v564 = vadd.f32 %v560, %v563
    %vm565 = vweird.f32 %v559
    %vm566 = vweird.f32 %v560
    %vm567 = vmor %vm565, %vm566
    %v568 = vsel %vm567, %v560, %v564
    %v569 = vand.u32 2147483647, %v559
    %vm570 = vcmp.eq.f32.partialorder %v569, 8.507059e+37
    %v571 = vand.u32 %v559, 2147483648
    %v572 = vor.u32 1.1754944e-38, %v571
    %v573 = vsel %vm570, %v572, %v568
    %v574 = vmul.f32 1.0, %v573
    %v575 = vmul.f32 %v555, %v574
    %v576 = vld [vmem:[%s3] sm:$0x1]
    %v577 = vunpack.c.l.bf16 %v576
    %v578 = vperm.slane %v577, 0
    %v579 = vmul.f32 %v575, %v578
    %580 = vadd.xlane.f32.xlu0 %v579
    %v581 = vpop.xlane.xlu0 %580
    %v582 = vld [vmem:[#allocation2] sm:$0x1]
    %v584 = vperm.slane %v582, 0
    %v586 = vadd.f32 %v581, %v584
    %587 = vxpose.xlu0.b32.start [1/16] %v586, 128
    %588 = vxpose.xlu0.b32.cont [2/16] 0.0, 128
    %589 = vxpose.xlu0.b32.cont [3/16] 0.0, 128
    %590 = vxpose.xlu0.b32.cont [4/16] 0.0, 128
    %591 = vxpose.xlu0.b32.cont [5/16] 0.0, 128
    %592 = vxpose.xlu0.b32.cont [6/16] 0.0, 128
    %593 = vxpose.xlu0.b32.cont [7/16] 0.0, 128
    %594 = vxpose.xlu0.b32.cont [8/16] 0.0, 128
    %595 = vxpose.xlu0.b32.cont [9/16] 0.0, 128
    %596 = vxpose.xlu0.b32.cont [10/16] 0.0, 128
    %597 = vxpose.xlu0.b32.cont [11/16] 0.0, 128
    %598 = vxpose.xlu0.b32.cont [12/16] 0.0, 128
    %599 = vxpose.xlu0.b32.cont [13/16] 0.0, 128
    %600 = vxpose.xlu0.b32.cont [14/16] 0.0, 128
    %601 = vxpose.xlu0.b32.cont [15/16] 0.0, 128
    %602 = vxpose.xlu0.b32.end [16/16] 0.0, 128
    %v603 = vpop.trf.xlu0
    %v604 = vpop.trf.xlu0
    %v605 = vpop.trf.xlu0
    %v606 = vpop.trf.xlu0
    %v607 = vpop.trf.xlu0
    %v608 = vpop.trf.xlu0
    %v609 = vpop.trf.xlu0
    %v610 = vpop.trf.xlu0
    %v611 = vpop.trf.xlu0
    %v612 = vpop.trf.xlu0
    %v613 = vpop.trf.xlu0
    %v614 = vpop.trf.xlu0
    %v615 = vpop.trf.xlu0
    %v616 = vpop.trf.xlu0
    %v617 = vpop.trf.xlu0
    %v618 = vpop.trf.xlu0
    %vm619 = vcmask 57344
    %v620 = vsel %vm619, %v603, -inf
    %621 = vmax.xlane.f32.xlu0 %v620
    %v622 = vpop.xlane.xlu0 %621
    %v623 = vsub.f32 %v603, %v622
    %v624 = vmul.f32 %v623, 1.442695
    %v625 = vpow.pop %v624
    %v626 = vsel %vm619, %v625, 0.0
    %627 = vadd.xlane.f32.xlu0 %v626
    %v628 = vpop.xlane.xlu0 %627
    %v629 = vrcp.pop %v628
    %v630 = vmul.f32 %v628, %v629
    %v631 = vsub.f32 1.0, %v630
    %v632 = vmul.f32 %v629, %v631
    %v633 = vadd.f32 %v629, %v632
    %vm634 = vweird.f32 %v628
    %vm635 = vweird.f32 %v629
    %vm636 = vmor %vm634, %vm635
    %v637 = vsel %vm636, %v629, %v633
    %v638 = vand.u32 2147483647, %v628
    %vm639 = vcmp.eq.f32.partialorder %v638, 8.507059e+37
    %v640 = vand.u32 %v628, 2147483648
    %v641 = vor.u32 1.1754944e-38, %v640
    %v642 = vsel %vm639, %v641, %v637
    %v643 = vmul.f32 %v625, %v642
    %644 = vst.msk [vmem:[#allocation8] sm:$0x1] %vm619, %v643
    // Predicated region
    $region30: #{tpu_custom_call.1} parent=1 // pred_check
      _
    $region31: #{tpu_custom_call.1} parent=1 // pred_check_branch
      %646 = sbr.rel (0) target = $region33
    $region32: #{tpu_custom_call.1} parent=1 // pred_region
      %648 = vsyncadd [#allocation5], 0
      %s650 = sshll.u32 [#allocation8], 4
      %s651 = int_to_ptr.vmem [resolvable:$true] %s650
      %s652 = sshll.u32 %s5, 4
      %s653 = int_to_ptr.hbm [resolvable:$true] %s652
      %655 = dma.vmem_to_hbm [thread:$0]  %s651, 16, %s653, [#allocation5]
    $region33: #{tpu_custom_call.1} parent=1 // pred_fallthru
      _
    // Predicated region
    $region34: #{tpu_custom_call.1} parent=1 // pred_check
      _
    $region35: #{tpu_custom_call.1} parent=1 // pred_check_branch
      %657 = sbr.rel (0) target = $region37
    $region36: #{tpu_custom_call.1} parent=1 // pred_region
      %659 = dma.done [#allocation5], 16
    $region37: #{tpu_custom_call.1} parent=1 // pred_fallthru
      _
    %660 = vsyncpa [#allocation4], 1
    %661 = vsyncpa [#allocation7], 1
    %662 = vsyncpa [#allocation5], 1

</llo_original>
